<compile_context>
chip_gen: v5e
topology: v5e:2x2
jax: 0.10.0
libtpu: 0.0.40
codegen_flags: <defaults>
</compile_context>

<pallas_src>
import functools

import jax
import jax.numpy as jnp
from jax import lax
from jax.experimental import pallas as pl
from jax.experimental.pallas import tpu as pltpu

IGNORE_INDEX = -100  # nn.CrossEntropyLoss default ignore_index


def _ce_kernel(logits_ref, labels_ref, sum_ref, cnt_ref):
    """One (batch b, seq-tile t) step of shifted cross-entropy.

    logits_ref: (1, tile_s, V)     logits for rows [t*tile_s, (t+1)*tile_s) of batch b
    labels_ref: (1, tile_s, 1)     already-shifted labels (IGNORE_INDEX on tail/padding)
    sum_ref / cnt_ref: (1, 1, 8, 128)  per-tile scalar partials, broadcast-filled
    """
    x = logits_ref[...]                                   # (1, tile_s, V), input dtype
    lbl = labels_ref[...]                                  # (1, tile_s, 1) int32

    # Row max and label-logit extraction stay in the input dtype (bf16 VALU on
    # v6e/v7x): both are exact (comparisons / single-nonzero selects, no rounding).
    m = jnp.max(x, axis=-1, keepdims=True)                 # (1, tile_s, 1)
    col = lax.broadcasted_iota(jnp.int32, x.shape, 2)
    tgt = jnp.sum(jnp.where(col == lbl, x, jnp.zeros((), x.dtype)),
                  axis=-1, keepdims=True)                  # (1, tile_s, 1)

    # exp/log pass in f32 (cast only here; single transcendental pass on the EUP).
    m32 = m.astype(jnp.float32)
    p = jnp.exp(x.astype(jnp.float32) - m32)               # (1, tile_s, V) f32
    lse = jnp.log(jnp.sum(p, axis=-1, keepdims=True)) + m32  # (1, tile_s, 1)

    valid = lbl != IGNORE_INDEX                             # (1, tile_s, 1) bool
    # jnp.where is a true select: garbage rows (padded / out-of-bounds seq tail) carry
    # IGNORE_INDEX labels and therefore contribute exactly 0 -- never propagate NaN/Inf.
    per_row = jnp.where(valid, lse - tgt.astype(jnp.float32), 0.0)

    # Compact the per-row partials to one (sum, count) pair for this tile (tiny XLU
    # reduce over <= tile_s values -- perfectly conditioned in f32), then write each as
    # a full broadcast-filled (8, 128) vreg so the store is a single unmasked vst.
    s = jnp.sum(per_row)
    c = jnp.sum(valid.astype(jnp.float32))
    sum_ref[...] = jnp.broadcast_to(s, sum_ref.shape)
    cnt_ref[...] = jnp.broadcast_to(c, cnt_ref.shape)


def _vmem_capacity_bytes():
    try:
        return int(pltpu.get_tpu_info().vmem_capacity_bytes)
    except Exception:
        return 64 << 20  # conservative fallback (v7x per-TC VMEM)


def _auto_tile_s(S, V, itemsize):
    """Largest row tile (multiple of 8/16) whose working set fits the VMEM budget.

    Working set per row of the tile: double-buffered input block (2 * itemsize bytes)
    plus ~2 full-width f32 temporaries created by the exp/log pass (2 * 4 bytes).
    """
    cap = _vmem_capacity_bytes()
    budget = (cap * 5) // 8              # ~40 MiB on v7x (64 MiB), ~80 MiB on v5e/v6e (128 MiB)
    per_row = V * (2 * itemsize + 2 * 4)
    t = budget // per_row
    step = 16 if itemsize < 4 else 8     # bf16: sublane-packing-friendly multiples of 16
    t = max(step, (t // step) * step)
    t = min(t, 1024)                     # per-step overhead is negligible beyond this
    row_cap = max(step, (S // step) * step)   # keep the block (mostly) inside the seq dim
    return int(min(t, row_cap))


@functools.partial(jax.jit, static_argnames=("tile_s",))
def _gpt_lm_loss_impl(logits, labels, *, tile_s):
    B, S, V = logits.shape
    itemsize = jnp.dtype(logits.dtype).itemsize

    n_rows = S - 1                          # rows contributing to the loss, per batch
    T = (n_rows + tile_s - 1) // tile_s     # seq tiles per batch element
    Tp = T * tile_s

    # Shift + pad only the (tiny) labels: position p predicts labels[:, p+1]; rows past
    # S-2 and any ragged-tile tail get IGNORE_INDEX so they contribute nothing. The big
    # logits tensor is never copied / padded -- it is tiled in place.
    shift_labels = labels[:, 1:].astype(jnp.int32)                      # (B, S-1)
    if Tp != n_rows:
        shift_labels = jnp.pad(shift_labels, ((0, 0), (0, Tp - n_rows)),
                               constant_values=IGNORE_INDEX)
    labels_3d = shift_labels.reshape(B, Tp, 1)

    # Generation-aware VMEM limit: double-buffered input block + f32 temporaries of the
    # exp pass + headroom, never exceeding (physical capacity - 4 MiB).
    cap = _vmem_capacity_bytes()
    block_bytes = tile_s * V * itemsize
    temp_bytes = 2 * tile_s * V * 4
    vmem_limit = int(min(max(2 * block_bytes + temp_bytes + (4 << 20), 16 << 20),
                         cap - (4 << 20)))

    cost = pl.CostEstimate(
        flops=int(5 * B * n_rows * V),
        transcendentals=int(B * n_rows * V),
        bytes_accessed=int(B * S * V * itemsize + B * S * 4 + B * T * 8 * 128 * 4 * 2),
    )

    sums, cnts = pl.pallas_call(
        _ce_kernel,
        out_shape=(
            jax.ShapeDtypeStruct((B, T, 8, 128), jnp.float32),
            jax.ShapeDtypeStruct((B, T, 8, 128), jnp.float32),
        ),
        grid_spec=pltpu.PrefetchScalarGridSpec(
            num_scalar_prefetch=0,
            grid=(B, T),
            in_specs=[
                pl.BlockSpec((1, tile_s, V), lambda b, t: (b, t, 0)),   # logits, in place
                pl.BlockSpec((1, tile_s, 1), lambda b, t: (b, t, 0)),   # shifted labels
            ],
            out_specs=(
                pl.BlockSpec((1, 1, 8, 128), lambda b, t: (b, t, 0, 0)),
                pl.BlockSpec((1, 1, 8, 128), lambda b, t: (b, t, 0, 0)),
            ),
        ),
        compiler_params=pltpu.CompilerParams(
            dimension_semantics=("parallel", "parallel"),
            vmem_limit_bytes=vmem_limit,
        ),
        cost_estimate=cost,
    )(logits, labels_3d)

    total = jnp.sum(sums[..., 0, 0])
    count = jnp.sum(cnts[..., 0, 0])
    # mean over non-ignored tokens (nn.CrossEntropyLoss default reduction).
    # NOTE: if every label is IGNORE_INDEX this is 0/0 = NaN, matching PyTorch.
    return total / count


def gpt_lm_loss(logits, labels, *, tile_s=None):
    """logits: [B, S, V] float (f32 or bf16), labels: [B, S] int -> scalar f32 loss."""
    B, S, V = logits.shape
    itemsize = jnp.dtype(logits.dtype).itemsize
    if tile_s is None:
        tile_s = _auto_tile_s(S, V, itemsize)
    assert tile_s >= 8 and tile_s % 8 == 0, "tile_s must be a positive multiple of 8"
    return _gpt_lm_loss_impl(logits, labels, tile_s=int(tile_s))


def _reference_loss(logits, labels):
    V = logits.shape[-1]
    sl = logits[:, :-1, :].reshape(-1, V).astype(jnp.float32)
    tl = labels[:, 1:].reshape(-1)
    valid = tl != IGNORE_INDEX
    safe = jnp.where(valid, tl, 0)
    lse = jax.nn.logsumexp(sl, axis=-1)
    tgt = jnp.take_along_axis(sl, safe[:, None], axis=-1)[:, 0]
    per = jnp.where(valid, lse - tgt, 0.0)
    return jnp.sum(per) / jnp.sum(valid.astype(jnp.float32))


if __name__ == "__main__":
    key = jax.random.PRNGKey(0)
    B, S, V = 2, 24, 512  # small shapes; vocab (lane axis) is a multiple of 128
    k1, k2 = jax.random.split(key)
    logits = jax.random.normal(k1, (B, S, V), dtype=jnp.float32)
    labels = jax.random.randint(k2, (B, S), 0, V, dtype=jnp.int32)
    # sprinkle in ignored labels to exercise ignore_index handling
    labels = labels.at[0, 3].set(IGNORE_INDEX)
    labels = labels.at[1, 10].set(IGNORE_INDEX)

    ref = _reference_loss(logits, labels)

    # 1) small explicit tile -> exercises multi-tile per-(b,t) partials + padded-tail masking
    loss_small = gpt_lm_loss(logits, labels, tile_s=8)
    jax.block_until_ready(loss_small)
    assert jnp.allclose(loss_small, ref, rtol=1e-5, atol=1e-5), (loss_small, ref)

    # 2) default auto-sized tile (generation-aware VMEM budget)
    loss_auto = gpt_lm_loss(logits, labels)
    jax.block_until_ready(loss_auto)
    assert jnp.allclose(loss_auto, ref, rtol=1e-5, atol=1e-5), (loss_auto, ref)

    # 3) bf16 logits path: max / target extraction in bf16, exp/log in f32
    logits_bf16 = logits.astype(jnp.bfloat16)
    ref_bf16 = _reference_loss(logits_bf16, labels)
    loss_bf16 = gpt_lm_loss(logits_bf16, labels)
    jax.block_until_ready(loss_bf16)
    assert jnp.allclose(loss_bf16, ref_bf16, rtol=1e-4, atol=1e-4), (loss_bf16, ref_bf16)

    print("KERNEL_OK")
</pallas_src>

<mosaic_0001>
module attributes {stable_mosaic.version = 11 : i64} {
  func.func @_ce_kernel(%arg0: i32, %arg1: i32, %arg2: memref<1x8x512xf32, #tpu.memory_space<vmem>>, %arg3: memref<1x8x1xi32, #tpu.memory_space<vmem>>, %arg4: memref<1x1x8x128xf32, #tpu.memory_space<vmem>>, %arg5: memref<1x1x8x128xf32, #tpu.memory_space<vmem>>) attributes {dimension_semantics = [#tpu.dimension_semantics<parallel>, #tpu.dimension_semantics<parallel>], iteration_bounds = array<i64: 2, 3>, scalar_prefetch = 0 : i64, scratch_operands = 0 : i64, tpu.core_type = #tpu.core_type<tc>, window_params = [{transform_indices = @transform_0, window_bounds = array<i64: 1, 8, 512>}, {transform_indices = @transform_1, window_bounds = array<i64: 1, 8, 1>}, {transform_indices = @transform_2, window_bounds = array<i64: 1, 1, 8, 128>}, {transform_indices = @transform_3, window_bounds = array<i64: 1, 1, 8, 128>}]} {
    %c0 = arith.constant 0 : index
    %c0_0 = arith.constant 0 : index
    %c0_1 = arith.constant 0 : index
    %0 = vector.load %arg2[%c0, %c0_0, %c0_1] : memref<1x8x512xf32, #tpu.memory_space<vmem>>, vector<1x8x512xf32>
    %c0_2 = arith.constant 0 : index
    %c0_3 = arith.constant 0 : index
    %c0_4 = arith.constant 0 : index
    %1 = vector.load %arg3[%c0_2, %c0_3, %c0_4] : memref<1x8x1xi32, #tpu.memory_space<vmem>>, vector<1x8x1xi32>
    %cst = arith.constant dense<0xFF800000> : vector<1x8xf32>
    %2 = vector.multi_reduction <maximumf>, %0, %cst [2] : vector<1x8x512xf32> to vector<1x8xf32>
    %3 = vector.shape_cast %2 : vector<1x8xf32> to vector<1x8x1xf32>
    %4 = tpu.iota {dimensions = array<i32: 2>} : vector<1x8x512xi32>
    %5 = vector.broadcast %1 : vector<1x8x1xi32> to vector<1x8x512xi32>
    %6 = arith.cmpi eq, %4, %5 : vector<1x8x512xi32>
    %cst_5 = arith.constant 0.000000e+00 : f32
    %7 = vector.broadcast %cst_5 : f32 to vector<1x8x512xf32>
    %8 = arith.select %6, %0, %7 : vector<1x8x512xi1>, vector<1x8x512xf32>
    %cst_6 = arith.constant dense<0.000000e+00> : vector<1x8xf32>
    %9 = vector.multi_reduction <add>, %8, %cst_6 [2] : vector<1x8x512xf32> to vector<1x8xf32>
    %10 = vector.shape_cast %9 : vector<1x8xf32> to vector<1x8x1xf32>
    %11 = vector.broadcast %3 : vector<1x8x1xf32> to vector<1x8x512xf32>
    %12 = arith.subf %0, %11 : vector<1x8x512xf32>
    %13 = math.exp %12 : vector<1x8x512xf32>
    %cst_7 = arith.constant dense<0.000000e+00> : vector<1x8xf32>
    %14 = vector.multi_reduction <add>, %13, %cst_7 [2] : vector<1x8x512xf32> to vector<1x8xf32>
    %15 = vector.shape_cast %14 : vector<1x8xf32> to vector<1x8x1xf32>
    %16 = math.log %15 : vector<1x8x1xf32>
    %17 = arith.addf %16, %3 : vector<1x8x1xf32>
    %c-100_i32 = arith.constant -100 : i32
    %18 = vector.broadcast %c-100_i32 : i32 to vector<1x8x1xi32>
    %19 = arith.cmpi ne, %1, %18 : vector<1x8x1xi32>
    %20 = arith.subf %17, %10 : vector<1x8x1xf32>
    %cst_8 = arith.constant 0.000000e+00 : f32
    %21 = vector.broadcast %cst_8 : f32 to vector<1x8x1xf32>
    %22 = arith.select %19, %20, %21 : vector<1x8x1xi1>, vector<1x8x1xf32>
    %23 = vector.shape_cast %22 : vector<1x8x1xf32> to vector<1x1x8x1xf32>
    %cst_9 = arith.constant dense<0.000000e+00> : vector<1xf32>
    %24 = vector.multi_reduction <add>, %23, %cst_9 [1, 2, 3] : vector<1x1x8x1xf32> to vector<1xf32>
    %25 = vector.shape_cast %24 : vector<1xf32> to vector<1x1x1x1xf32>
    %26 = vector.extract %25[0, 0, 0, 0] : f32 from vector<1x1x1x1xf32>
    %27 = arith.extui %19 : vector<1x8x1xi1> to vector<1x8x1xi32>
    %28 = arith.sitofp %27 : vector<1x8x1xi32> to vector<1x8x1xf32>
    %29 = vector.shape_cast %28 : vector<1x8x1xf32> to vector<1x1x8x1xf32>
    %cst_10 = arith.constant dense<0.000000e+00> : vector<1xf32>
    %30 = vector.multi_reduction <add>, %29, %cst_10 [1, 2, 3] : vector<1x1x8x1xf32> to vector<1xf32>
    %31 = vector.shape_cast %30 : vector<1xf32> to vector<1x1x1x1xf32>
    %32 = vector.extract %31[0, 0, 0, 0] : f32 from vector<1x1x1x1xf32>
    %33 = vector.broadcast %26 : f32 to vector<1x1x8x128xf32>
    %c0_11 = arith.constant 0 : index
    %c0_12 = arith.constant 0 : index
    %c0_13 = arith.constant 0 : index
    %c0_14 = arith.constant 0 : index
    %34 = vector.load %arg4[%c0_11, %c0_12, %c0_13, %c0_14] : memref<1x1x8x128xf32, #tpu.memory_space<vmem>>, vector<1x1x8x128xf32>
    tpu.vector_store %arg4[%c0_11, %c0_12, %c0_13, %c0_14], %33 {strides = array<i32>} : memref<1x1x8x128xf32, #tpu.memory_space<vmem>>, vector<1x1x8x128xf32>,
    %35 = vector.broadcast %32 : f32 to vector<1x1x8x128xf32>
    %c0_15 = arith.constant 0 : index
    %c0_16 = arith.constant 0 : index
    %c0_17 = arith.constant 0 : index
    %c0_18 = arith.constant 0 : index
    %36 = vector.load %arg5[%c0_15, %c0_16, %c0_17, %c0_18] : memref<1x1x8x128xf32, #tpu.memory_space<vmem>>, vector<1x1x8x128xf32>
    tpu.vector_store %arg5[%c0_15, %c0_16, %c0_17, %c0_18], %35 {strides = array<i32>} : memref<1x1x8x128xf32, #tpu.memory_space<vmem>>, vector<1x1x8x128xf32>,
    return
  }
  func.func @transform_0(%arg0: i32, %arg1: i32) -> (i32, i32, i32) {
    %c0_i32 = arith.constant 0 : i32
    %c0_i32_0 = arith.constant 0 : i32
    return %arg0, %arg1, %c0_i32 : i32, i32, i32
  }
  func.func @transform_1(%arg0: i32, %arg1: i32) -> (i32, i32, i32) {
    %c0_i32 = arith.constant 0 : i32
    %c0_i32_0 = arith.constant 0 : i32
    return %arg0, %arg1, %c0_i32 : i32, i32, i32
  }
  func.func @transform_2(%arg0: i32, %arg1: i32) -> (i32, i32, i32, i32) {
    %c0_i32 = arith.constant 0 : i32
    %c0_i32_0 = arith.constant 0 : i32
    %c0_i32_1 = arith.constant 0 : i32
    return %arg0, %arg1, %c0_i32, %c0_i32_0 : i32, i32, i32, i32
  }
  func.func @transform_3(%arg0: i32, %arg1: i32) -> (i32, i32, i32, i32) {
    %c0_i32 = arith.constant 0 : i32
    %c0_i32_0 = arith.constant 0 : i32
    %c0_i32_1 = arith.constant 0 : i32
    return %arg0, %arg1, %c0_i32, %c0_i32_0 : i32, i32, i32, i32
  }
}

</mosaic_0001>

<llo_original>
// kernel: _gpt_lm_loss_impl.1
$region0: #{_gpt_lm_loss_impl.1}
  #allocation0 [shape = 'u32[]', space=smem, size = 0x4, offset = 0x4, fixed_abs, tag = 'smem constant byte address 0x4 - core index']
  #allocation1 [shape = 'u32[72,128]{1,0:T(1,128)}', space=vmem, size = 0x9000, scoped, tag = 'internal scratch']
  %s0 = inlined_call_operand.hbm [shape: f32[2,24,512], index: 0, kind: input, shape index: {}]
  %s1 = inlined_call_operand.vmem [shape: s32[2,24,1], index: 1, kind: input, shape index: {}]
  %s2 = inlined_call_operand.vmem [shape: f32[2,3,8,128], index: 2, kind: output, shape index: {0}]
  %s3 = inlined_call_operand.vmem [shape: f32[2,3,8,128], index: 3, kind: output, shape index: {1}]
  %4 = xla_tuple %s2, %s3
  %s5 = sld [smem:[#allocation0]]
  $region53: #{_gpt_lm_loss_impl.1} parent=0
    _
  %s7 = ssub.s32 1, %s5
  %s8 = scalar_select 0, %s7, %s5
  $region1: #{_gpt_lm_loss_impl.1} parent=0
    #allocation2 [shape = 'u8[32768]{0}', space=vmem, size = 0x8000, scoped, tag = 'input window, operand 0']
    #allocation3 [shape = 's32[2]{0}', space=sflag, size = 0x8, scoped, tag = 'scoped memory for _gpt_lm_loss_impl.1']
    %9 = vsyncpa [#allocation3], 0
    %s10 = scalar_lea.sflag [#allocation3], 1
    %11 = vsyncpa %s10, 0
    loop: start=0, step=1, limit=8
    $region2: #{_gpt_lm_loss_impl.1} parent=1 // loop_pre_header
      _
    $region3: #{_gpt_lm_loss_impl.1} parent=1 // loop_header
      %s13 = sphi 0, %s17
      %p14 = scmp.ge.s32.totalorder %s13, 8
      %s20 = sphi 0, %s32
      %s21 = sphi 0, %s28
      %s22 = sphi 0, %s20
      %s23 = sphi 0, %s21
      %s24 = sphi 0, %s22
      %s25 = sphi 0, %s23
      %s37 = sphi 0, %s39
      %s40 = sphi 0, %s37
      %s41 = sphi 0, %s40
      %s57 = sphi 0, %s41
      %s65 = sphi 0, %s67
      %s68 = sphi 0, %s65
      %s69 = sphi 0, %s68
      %s85 = sphi 0, %s69
      %s93 = sphi 0, %s95
      %s96 = sphi 0, %s93
      %s97 = sphi 0, %s96
      %s113 = sphi 0, %s97
      %s121 = sphi 0, %s123
      %s124 = sphi 0, %s121
      %s125 = sphi 0, %s124
      %s141 = sphi 0, %s125
    $region4: #{_gpt_lm_loss_impl.1} parent=1 // loop_header_branch
      %16 = sbr.rel (%p14) target = $region8
    $region5: #{_gpt_lm_loss_impl.1} parent=1 // loop_body
      %s18 = ssub.s32 %s13, 1
      %s19 = ssub.s32 %s13, 2
      %s26 = sadd.s32 1, %s21
      %p27 = scmp.ge.s32.totalorder %s26, 3
      %s28 = scalar_select %p27, 0, %s26
      %s29 = sadd.s32 1, %s20
      %s30 = scalar_select %p27, %s29, %s20
      %p31 = scmp.ge.s32.totalorder %s30, 2
      %s32 = scalar_select %p31, 0, %s30
      %s33 = ssub.s32 %s20, %s32
      %s34 = ssub.s32 %s21, %s28
      %s35 = sor.u32 %s33, %s34
      %p36 = scmp.eq.s32.totalorder %s35, 0
      %s38 = sadd.s32 %s37, 1
      %s39 = scalar_select %p36, %s37, %s38
      %p42 = pneg %p36
      %p43 = scmp.eq.s32.totalorder %s13, 5
      %p44 = por %p42, %p43
      %p45 = scmp.ne.s32.totalorder %s37, %s40
      %p46 = scmp.eq.s32.totalorder %s13, 0
      %p47 = por %p45, %p46
      %p48 = scmp.ne.s32.totalorder %s37, %s40
      %p49 = scmp.eq.s32.totalorder %s18, 5
      %p50 = por %p48, %p49
      %p51 = scmp.ne.s32.totalorder %s40, %s41
      %p52 = scmp.eq.s32.totalorder %s18, 0
      %p53 = por %p51, %p52
      %p54 = scmp.ne.s32.totalorder %s40, %s41
      %p55 = scmp.eq.s32.totalorder %s19, 5
      %p56 = por %p54, %p55
      %p58 = scmp.ne.s32.totalorder %s41, %s57
      %p59 = scmp.eq.s32.totalorder %s19, 0
      %p60 = por %p58, %p59
      %s61 = ssub.s32 %s20, %s32
      %s62 = ssub.s32 %s21, %s28
      %s63 = sor.u32 %s61, %s62
      %p64 = scmp.eq.s32.totalorder %s63, 0
      %s66 = sadd.s32 %s65, 1
      %s67 = scalar_select %p64, %s65, %s66
      %p70 = pneg %p64
      %p71 = scmp.eq.s32.totalorder %s13, 5
      %p72 = por %p70, %p71
      %p73 = scmp.ne.s32.totalorder %s65, %s68
      %p74 = scmp.eq.s32.totalorder %s13, 0
      %p75 = por %p73, %p74
      %p76 = scmp.ne.s32.totalorder %s65, %s68
      %p77 = scmp.eq.s32.totalorder %s18, 5
      %p78 = por %p76, %p77
      %p79 = scmp.ne.s32.totalorder %s68, %s69
      %p80 = scmp.eq.s32.totalorder %s18, 0
      %p81 = por %p79, %p80
      %p82 = scmp.ne.s32.totalorder %s68, %s69
      %p83 = scmp.eq.s32.totalorder %s19, 5
      %p84 = por %p82, %p83
      %p86 = scmp.ne.s32.totalorder %s69, %s85
      %p87 = scmp.eq.s32.totalorder %s19, 0
      %p88 = por %p86, %p87
      %s89 = ssub.s32 %s20, %s32
      %s90 = ssub.s32 %s21, %s28
      %s91 = sor.u32 %s89, %s90
      %p92 = scmp.eq.s32.totalorder %s91, 0
      %s94 = sadd.s32 %s93, 1
      %s95 = scalar_select %p92, %s93, %s94
      %p98 = pneg %p92
      %p99 = scmp.eq.s32.totalorder %s13, 5
      %p100 = por %p98, %p99
      %p101 = scmp.ne.s32.totalorder %s93, %s96
      %p102 = scmp.eq.s32.totalorder %s13, 0
      %p103 = por %p101, %p102
      %p104 = scmp.ne.s32.totalorder %s93, %s96
      %p105 = scmp.eq.s32.totalorder %s18, 5
      %p106 = por %p104, %p105
      %p107 = scmp.ne.s32.totalorder %s96, %s97
      %p108 = scmp.eq.s32.totalorder %s18, 0
      %p109 = por %p107, %p108
      %p110 = scmp.ne.s32.totalorder %s96, %s97
      %p111 = scmp.eq.s32.totalorder %s19, 5
      %p112 = por %p110, %p111
      %p114 = scmp.ne.s32.totalorder %s97, %s113
      %p115 = scmp.eq.s32.totalorder %s19, 0
      %p116 = por %p114, %p115
      %s117 = ssub.s32 %s20, %s32
      %s118 = ssub.s32 %s21, %s28
      %s119 = sor.u32 %s117, %s118
      %p120 = scmp.eq.s32.totalorder %s119, 0
      %s122 = sadd.s32 %s121, 1
      %s123 = scalar_select %p120, %s121, %s122
      %p126 = pneg %p120
      %p127 = scmp.eq.s32.totalorder %s13, 5
      %p128 = por %p126, %p127
      %p129 = scmp.ne.s32.totalorder %s121, %s124
      %p130 = scmp.eq.s32.totalorder %s13, 0
      %p131 = por %p129, %p130
      %p132 = scmp.ne.s32.totalorder %s121, %s124
      %p133 = scmp.eq.s32.totalorder %s18, 5
      %p134 = por %p132, %p133
      %p135 = scmp.ne.s32.totalorder %s124, %s125
      %p136 = scmp.eq.s32.totalorder %s18, 0
      %p137 = por %p135, %p136
      %p138 = scmp.ne.s32.totalorder %s124, %s125
      %p139 = scmp.eq.s32.totalorder %s19, 5
      %p140 = por %p138, %p139
      %p142 = scmp.ne.s32.totalorder %s125, %s141
      %p143 = scmp.eq.s32.totalorder %s19, 0
      %p144 = por %p142, %p143
      %p145 = scmp.le.s32.totalorder 1, %s13
      %p146 = scmp.lt.s32.totalorder %s13, 7
      %p147 = pnand %p145, %p146
      %p148 = pneg %p147
      // Predicated region
      $region9: #{_gpt_lm_loss_impl.1} parent=5 // pred_check
        _
      $region10: #{_gpt_lm_loss_impl.1} parent=5 // pred_check_branch
        %150 = sbr.rel (%p147) target = $region12
      $region11: #{_gpt_lm_loss_impl.1} parent=5 // pred_region
        %s151 = ssub.s32 %s13, 1
      $region12: #{_gpt_lm_loss_impl.1} parent=5 // pred_fallthru
        _
      %p152 = scmp.lt.s32.totalorder %s13, 6
      // Predicated region
      $region13: #{_gpt_lm_loss_impl.1} parent=5 // pred_check
        %p153 = pneg %p152
      $region14: #{_gpt_lm_loss_impl.1} parent=5 // pred_check_branch
        %155 = sbr.rel (%p153) target = $region16
      $region15: #{_gpt_lm_loss_impl.1} parent=5 // pred_region
        // Predicated region
        $region17: #{_gpt_lm_loss_impl.1} parent=15 // pred_check
          %p156 = pneg %p47
        $region18: #{_gpt_lm_loss_impl.1} parent=15 // pred_check_branch
          %158 = sbr.rel (%p156) target = $region20
        $region19: #{_gpt_lm_loss_impl.1} parent=15 // pred_region
          %s159 = sand.u32 %s37, 1
          %s160 = scalar_lea.sflag [#allocation3], %s159
          %s161 = sand.u32 %s37, 1
          %s162 = smul.addr %s161, 32
          %s163 = scalar_lea.vmem [#allocation2], %s162
          %165 = vsyncadd %s160, 0
          %s166 = smul.addr %s21, 4
          %s167 = smul.addr %s20, 12
          %s168 = sadd.s32 %s166, %s167
          %s169 = smul.addr %s168, 8
          %s170 = scalar_lea.hbm %s0, %s169
          %s172 = sshll.u32 %s170, 4
          %s173 = int_to_ptr.hbm [resolvable:$true] %s172
          %s174 = sshll.u32 %s163, 4
          %s175 = int_to_ptr.vmem [resolvable:$true] %s174
          %177 = dma.hbm_to_vmem [thread:$0]  %s173, 512, %s175, %s160
        $region20: #{_gpt_lm_loss_impl.1} parent=15 // pred_fallthru
          _
        // Predicated region
        $region21: #{_gpt_lm_loss_impl.1} parent=15 // pred_check
          %p178 = pneg %p75
        $region22: #{_gpt_lm_loss_impl.1} parent=15 // pred_check_branch
          %180 = sbr.rel (%p178) target = $region24
        $region23: #{_gpt_lm_loss_impl.1} parent=15 // pred_region
          %p181 = scmp.lt.s32.totalorder %s20, 1
          %s182 = scalar_select %p181, %s20, 1
          %p183 = scmp.lt.s32.totalorder %s21, 2
          %s184 = scalar_select %p183, %s21, 2
          %s185 = smul.addr %s182, 3
          %s186 = sadd.s32 %s184, %s185
          %s187 = smul.addr %s186, 8
          %s188 = scalar_lea.vmem %s1, %s187
        $region24: #{_gpt_lm_loss_impl.1} parent=15 // pred_fallthru
          _
      $region16: #{_gpt_lm_loss_impl.1} parent=5 // pred_fallthru
        _
      %p189 = scmp.le.s32.totalorder 1, %s13
      %p190 = scmp.lt.s32.totalorder %s13, 7
      %p191 = pnand %p189, %p190
      %p192 = pneg %p191
      // Predicated region
      $region25: #{_gpt_lm_loss_impl.1} parent=5 // pred_check
        _
      $region26: #{_gpt_lm_loss_impl.1} parent=5 // pred_check_branch
        %194 = sbr.rel (%p191) target = $region28
      $region27: #{_gpt_lm_loss_impl.1} parent=5 // pred_region
        %s195 = ssub.s32 %s13, 1
        %s196 = sand.u32 %s40, 1
        %s197 = scalar_lea.sflag [#allocation3], %s196
        %s198 = sand.u32 %s40, 1
        %s199 = smul.addr %s198, 32
        %s200 = scalar_lea.vmem [#allocation2], %s199
        // Predicated region
        $region29: #{_gpt_lm_loss_impl.1} parent=27 // pred_check
          %p201 = pneg %p53
        $region30: #{_gpt_lm_loss_impl.1} parent=27 // pred_check_branch
          %203 = sbr.rel (%p201) target = $region32
        $region31: #{_gpt_lm_loss_impl.1} parent=27 // pred_region
          %205 = dma.done %s197, 512
        $region32: #{_gpt_lm_loss_impl.1} parent=27 // pred_fallthru
          _
        %s206 = sand.u32 %s40, 1
        %s207 = scalar_lea.sflag [#allocation3], %s206
        %s208 = sand.u32 %s40, 1
        %s209 = smul.addr %s208, 32
        %s210 = scalar_lea.vmem [#allocation2], %s209
        %p211 = pneg %p53
        %p212 = pneg %p50
        %p213 = scmp.lt.s32.totalorder %s22, 1
        %s214 = scalar_select %p213, %s22, 1
        %p215 = scmp.lt.s32.totalorder %s23, 2
        %s216 = scalar_select %p215, %s23, 2
        %s217 = smul.addr %s214, 3
        %s218 = sadd.s32 %s216, %s217
        %s219 = smul.addr %s218, 8
        %s220 = scalar_lea.vmem %s1, %s219
        %p221 = pneg %p81
        %p222 = pneg %p78
        %p223 = pneg %p109
        %p224 = pneg %p106
        %p225 = scmp.lt.s32.totalorder %s22, 1
        %s226 = scalar_select %p225, %s22, 1
        %p227 = scmp.lt.s32.totalorder %s23, 2
        %s228 = scalar_select %p227, %s23, 2
        %s229 = smul.addr %s226, 3
        %s230 = sadd.s32 %s228, %s229
        %s231 = smul.addr %s230, 8
        %s232 = scalar_lea.vmem %s2, %s231
        %p233 = pneg %p137
        %p234 = pneg %p134
        %p235 = scmp.lt.s32.totalorder %s22, 1
        %s236 = scalar_select %p235, %s22, 1
        %p237 = scmp.lt.s32.totalorder %s23, 2
        %s238 = scalar_select %p237, %s23, 2
        %s239 = smul.addr %s236, 3
        %s240 = sadd.s32 %s238, %s239
        %s241 = smul.addr %s240, 8
        %s242 = scalar_lea.vmem %s3, %s241
        %p243 = scmp.lt.s32.totalorder %s22, 1
        %s244 = scalar_select %p243, %s22, 1
        %p245 = scmp.lt.s32.totalorder %s23, 2
        %s246 = scalar_select %p245, %s23, 2
        %s247 = smul.addr %s244, 3
        %s248 = sadd.s32 %s246, %s247
        %s249 = smul.addr %s248, 8
        %s250 = scalar_lea.vmem %s1, %s249
        %p251 = scmp.lt.s32.totalorder %s22, 1
        %s252 = scalar_select %p251, %s22, 1
        %p253 = scmp.lt.s32.totalorder %s23, 2
        %s254 = scalar_select %p253, %s23, 2
        %s255 = smul.addr %s252, 3
        %s256 = sadd.s32 %s254, %s255
        %s257 = smul.addr %s256, 8
        %s258 = scalar_lea.vmem %s2, %s257
        %p259 = scmp.lt.s32.totalorder %s22, 1
        %s260 = scalar_select %p259, %s22, 1
        %p261 = scmp.lt.s32.totalorder %s23, 2
        %s262 = scalar_select %p261, %s23, 2
        %s263 = smul.addr %s260, 3
        %s264 = sadd.s32 %s262, %s263
        %s265 = smul.addr %s264, 8
        %s266 = scalar_lea.vmem %s3, %s265
        %v267 = vld [vmem:[%s200] sm:$0xff]
        %v268 = vld [vmem:[%s200 + $0x8] sm:$0xff]
        %v269 = vld [vmem:[%s200 + $0x10] sm:$0xff]
        %v270 = vld [vmem:[%s200 + $0x18] sm:$0xff]
        %v271 = vld [vmem:[%s250] sm:$0xff]
        %v272 = vmax.f32 %v267, %v268
        %v273 = vmax.f32 %v269, %v270
        %v274 = vmax.f32 %v272, %v273
        %275 = vmax.xlane.f32.xlu0 %v274
        %v276 = vpop.xlane.xlu0 %275
        %v277 = vlaneseq
        %v278 = vand.u32 %v277, 127
        %v279 = vadd.s32 %v278, 128
        %v280 = vadd.s32 %v278, 256
        %v281 = vadd.s32 %v278, 384
        %282 = vset.pattern.permute.xlu0 0
        %283 = vperm.xlu0 %282, %v271
        %v284 = vpop.permute.xlu0 %283
        %vm285 = vcmp.eq.s32.totalorder %v278, %v284
        %vm286 = vcmp.eq.s32.totalorder %v279, %v284
        %vm287 = vcmp.eq.s32.totalorder %v280, %v284
        %vm288 = vcmp.eq.s32.totalorder %v281, %v284
        %v289 = vsel %vm285, %v267, 0.0
        %v290 = vsel %vm286, %v268, 0.0
        %v291 = vsel %vm287, %v269, 0.0
        %v292 = vsel %vm288, %v270, 0.0
        %v293 = vadd.f32 %v289, %v290
        %v294 = vadd.f32 %v293, %v291
        %v295 = vadd.f32 %v294, %v292
        %296 = vadd.xlane.f32.xlu0 %v295
        %v297 = vpop.xlane.xlu0 %296
        %v298 = vsub.f32 %v267, %v276
        %v299 = vsub.f32 %v268, %v276
        %v300 = vsub.f32 %v269, %v276
        %v301 = vsub.f32 %v270, %v276
        %v302 = vmul.f32 %v298, 1.442695
        %v303 = vpow.pop %v302
        %v304 = vmul.f32 %v299, 1.442695
        %v305 = vpow.pop %v304
        %v306 = vmul.f32 %v300, 1.442695
        %v307 = vpow.pop %v306
        %v308 = vmul.f32 %v301, 1.442695
        %v309 = vpow.pop %v308
        %v310 = vadd.f32 %v303, %v305
        %v311 = vadd.f32 %v310, %v307
        %v312 = vadd.f32 %v311, %v309
        %313 = vadd.xlane.f32.xlu0 %v312
        %v314 = vpop.xlane.xlu0 %313
        %v315 = vlog2.pop %v314
        %v316 = vmul.f32 %v315, 0.6931472
        %v317 = vadd.f32 %v316, %v276
        %vm318 = vcmp.ne.s32.totalorder %v271, 4294967196
        %v319 = vsub.f32 %v317, %v297
        %v320 = vsel %vm318, %v319, 0.0
        %vm321 = vcmask 7168
        %v322 = vsel %vm321, %v320, 0.0
        %323 = vadd.xlane.f32.xlu0 %v322
        %v324 = vpop.xlane.xlu0 %323
        %v325 = vrot.slane %v324, 4
        %v326 = vadd.f32 %v324, %v325
        %v327 = vrot.slane %v326, 2
        %v328 = vadd.f32 %v326, %v327
        %v329 = vrot.slane %v328, 1
        %v330 = vadd.f32 %v328, %v329
        %s331 = vtos %v330
        %v332 = vsel %vm318, 1, 0
        %v333 = vcvt.s32.f32 %v332
        %v334 = vsel %vm321, %v333, 0.0
        %335 = vadd.xlane.f32.xlu0 %v334
        %v336 = vpop.xlane.xlu0 %335
        %v337 = vrot.slane %v336, 4
        %v338 = vadd.f32 %v336, %v337
        %v339 = vrot.slane %v338, 2
        %v340 = vadd.f32 %v338, %v339
        %v341 = vrot.slane %v340, 1
        %v342 = vadd.f32 %v340, %v341
        %s343 = vtos %v342
        %v344 = vstv %s331
        %345 = vst [vmem:[%s258] sm:$0xff] %v344
        %v346 = vstv %s343
        %347 = vst [vmem:[%s266] sm:$0xff] %v346
        %p348 = scmp.lt.s32.totalorder %s22, 1
        %s349 = scalar_select %p348, %s22, 1
        %p350 = scmp.lt.s32.totalorder %s23, 2
        %s351 = scalar_select %p350, %s23, 2
        %s352 = smul.addr %s349, 3
        %s353 = sadd.s32 %s351, %s352
        %s354 = smul.addr %s353, 8
        %s355 = scalar_lea.vmem %s2, %s354
        %p356 = scmp.lt.s32.totalorder %s22, 1
        %s357 = scalar_select %p356, %s22, 1
        %p358 = scmp.lt.s32.totalorder %s23, 2
        %s359 = scalar_select %p358, %s23, 2
        %s360 = smul.addr %s357, 3
        %s361 = sadd.s32 %s359, %s360
        %s362 = smul.addr %s361, 8
        %s363 = scalar_lea.vmem %s3, %s362
        // Predicated region
        $region33: #{_gpt_lm_loss_impl.1} parent=27 // pred_check
          %p364 = pneg %p106
        $region34: #{_gpt_lm_loss_impl.1} parent=27 // pred_check_branch
          %366 = sbr.rel (%p364) target = $region36
        $region35: #{_gpt_lm_loss_impl.1} parent=27 // pred_region
          _
        $region36: #{_gpt_lm_loss_impl.1} parent=27 // pred_fallthru
          _
        // Predicated region
        $region37: #{_gpt_lm_loss_impl.1} parent=27 // pred_check
          %p367 = pneg %p134
        $region38: #{_gpt_lm_loss_impl.1} parent=27 // pred_check_branch
          %369 = sbr.rel (%p367) target = $region40
        $region39: #{_gpt_lm_loss_impl.1} parent=27 // pred_region
          _
        $region40: #{_gpt_lm_loss_impl.1} parent=27 // pred_fallthru
          _
      $region28: #{_gpt_lm_loss_impl.1} parent=5 // pred_fallthru
        _
      %p370 = scmp.le.s32.totalorder 2, %s13
      // Predicated region
      $region41: #{_gpt_lm_loss_impl.1} parent=5 // pred_check
        %p371 = pneg %p370
      $region42: #{_gpt_lm_loss_impl.1} parent=5 // pred_check_branch
        %373 = sbr.rel (%p371) target = $region44
      $region43: #{_gpt_lm_loss_impl.1} parent=5 // pred_region
        %s374 = ssub.s32 %s13, 2
        // Predicated region
        $region45: #{_gpt_lm_loss_impl.1} parent=43 // pred_check
          %p375 = pneg %p112
        $region46: #{_gpt_lm_loss_impl.1} parent=43 // pred_check_branch
          %377 = sbr.rel (%p375) target = $region48
        $region47: #{_gpt_lm_loss_impl.1} parent=43 // pred_region
          %p378 = scmp.lt.s32.totalorder %s24, 1
          %s379 = scalar_select %p378, %s24, 1
          %p380 = scmp.lt.s32.totalorder %s25, 2
          %s381 = scalar_select %p380, %s25, 2
          %s382 = smul.addr %s379, 3
          %s383 = sadd.s32 %s381, %s382
          %s384 = smul.addr %s383, 8
          %s385 = scalar_lea.vmem %s2, %s384
        $region48: #{_gpt_lm_loss_impl.1} parent=43 // pred_fallthru
          _
        // Predicated region
        $region49: #{_gpt_lm_loss_impl.1} parent=43 // pred_check
          %p386 = pneg %p140
        $region50: #{_gpt_lm_loss_impl.1} parent=43 // pred_check_branch
          %388 = sbr.rel (%p386) target = $region52
        $region51: #{_gpt_lm_loss_impl.1} parent=43 // pred_region
          %p389 = scmp.lt.s32.totalorder %s24, 1
          %s390 = scalar_select %p389, %s24, 1
          %p391 = scmp.lt.s32.totalorder %s25, 2
          %s392 = scalar_select %p391, %s25, 2
          %s393 = smul.addr %s390, 3
          %s394 = sadd.s32 %s392, %s393
          %s395 = smul.addr %s394, 8
          %s396 = scalar_lea.vmem %s3, %s395
        $region52: #{_gpt_lm_loss_impl.1} parent=43 // pred_fallthru
          _
      $region44: #{_gpt_lm_loss_impl.1} parent=5 // pred_fallthru
        _
    $region6: #{_gpt_lm_loss_impl.1} parent=1 // loop_footer
      %s17 = sadd.s32 1, %s13
    $region7: #{_gpt_lm_loss_impl.1} parent=1 // loop_footer_branch
      %12 = sbr.rel target = $region3
    $region8: #{_gpt_lm_loss_impl.1} parent=1 // loop_exit
      _
    %397 = vsyncpa [#allocation3], 1
    %s398 = scalar_lea.sflag [#allocation3], 1
    %399 = vsyncpa %s398, 1

</llo_original>
